<compile_context>
chip_gen: v7x
topology: tpu7x:2x2x1
jax: 0.10.0
libtpu: 0.0.40
codegen_flags: <defaults>
</compile_context>

<pallas_src>
import functools

import jax
import jax.numpy as jnp
from jax.experimental import pallas as pl
from jax.experimental.pallas import tpu as pltpu

_LANE = 128      # lane width: hidden / output dims padded to multiples of this
_SUBLANE = 8     # sublane width: batch tile must be a multiple of this


def _round_up(x, m):
    return ((x + m - 1) // m) * m


def _cdiv(a, b):
    return -(-a // b)


def _choose_tiles(n, tile_n):
    """Balanced batch tiling: row padding < one tile, grid >= 2 when possible."""
    num_tiles = max(_cdiv(n, tile_n), 2 if n >= 2 * _SUBLANE else 1)
    tile = _round_up(_cdiv(n, num_tiles), _SUBLANE)
    n_pad = tile * num_tiles
    return tile, num_tiles, n_pad


# ----------------------------------------------------------------------------
# Fused MLP kernel: one grid step = one batch tile through ALL layers.
# Args: (x_ref, w0, b0, w1, b1, ..., wL, bL, o_ref)
# ----------------------------------------------------------------------------
def _fused_mlp_kernel(x_ref, *refs, num_tanh_layers, num_linear_layers):
    o_ref = refs[-1]
    wb = refs[:-1]
    compute_dtype = x_ref.dtype
    h = x_ref[...]
    for li in range(num_linear_layers):
        w = wb[2 * li][...]          # (d_in_pad, d_out_pad), VMEM-resident, compute dtype
        b = wb[2 * li + 1][...]      # (1, d_out_pad), f32 -> broadcasts over rows
        # MXU matmul with f32 accumulation; bias add in f32.
        y = jnp.dot(h, w, preferred_element_type=jnp.float32) + b
        if li < num_tanh_layers:     # hidden layer: Linear -> tanh -> dropout(eval = id)
            y = jnp.tanh(y)          # f32 tanh (v5e has no bf16 VPU/EUP)
        # Cast back to the compute dtype only when feeding another MXU pass;
        # keep the last layer's f32 result full precision for the store.
        h = y if li == num_linear_layers - 1 else y.astype(compute_dtype)
    o_ref[...] = h.astype(o_ref.dtype)


# ----------------------------------------------------------------------------
# Parameter construction (PyTorch-Linear style uniform init) + preparation.
# ----------------------------------------------------------------------------
def init_feature_map_params(key, d_in_x, layers_x, output_dim):
    params = {"hidden": [], "final": None}
    dims = [d_in_x] + list(layers_x)
    for i in range(len(layers_x)):
        key, kw, kb = jax.random.split(key, 3)
        bound = 1.0 / jnp.sqrt(jnp.float32(dims[i]))
        w = jax.random.uniform(kw, (dims[i], dims[i + 1]), jnp.float32, -bound, bound)
        b = jax.random.uniform(kb, (dims[i + 1],), jnp.float32, -bound, bound)
        params["hidden"].append((w, b))
    if len(layers_x) > 1:
        key, kw, kb = jax.random.split(key, 3)
        bound = 1.0 / jnp.sqrt(jnp.float32(layers_x[-1]))
        w = jax.random.uniform(kw, (layers_x[-1], output_dim), jnp.float32, -bound, bound)
        b = jax.random.uniform(kb, (output_dim,), jnp.float32, -bound, bound)
        params["final"] = (w, b)
    return params


def prepare_feature_map_params(params, compute_dtype=jnp.bfloat16):
    """Pad/cast weights ONCE (not per forward call).

    Input feature dim stays at its true width (it is only the MXU K dim; the
    MXU pads K internally at zero HBM cost).  Hidden/output dims are padded to
    128 lanes (lane-dense MXU pushes and unmasked stores).  Padded W columns
    and b entries are zero, so tanh(0)=0 never contaminates real outputs.
    """
    hidden = params["hidden"]
    final = params["final"]
    layers = list(hidden) + ([final] if final is not None else [])
    d_in = layers[0][0].shape[0]
    dims = [d_in] + [w.shape[1] for (w, _) in layers]
    dims_pad = [d_in] + [_round_up(d, _LANE) for d in dims[1:]]

    wb = []
    for li, (w, b) in enumerate(layers):
        di, do = w.shape
        dip, dop = dims_pad[li], dims_pad[li + 1]
        w_p = jnp.zeros((dip, dop), compute_dtype).at[:di, :do].set(w.astype(compute_dtype))
        b_p = jnp.zeros((1, dop), jnp.float32).at[0, :do].set(b)   # bias stays f32
        wb += [w_p, b_p]

    return {
        "wb": tuple(wb),
        "dims_pad": tuple(dims_pad),
        "num_tanh": len(hidden),
        "num_linear": len(layers),
        "d_out": dims[-1],
    }


# ----------------------------------------------------------------------------
# Forward pass.
# ----------------------------------------------------------------------------
@functools.partial(
    jax.jit,
    static_argnames=("num_tanh", "num_linear", "d_out", "dims_pad", "tile_n"),
)
def _forward_impl(x_cov, wb, *, num_tanh, num_linear, d_out, dims_pad, tile_n):
    n, d_in = x_cov.shape
    compute_dtype = wb[0].dtype

    tile, grid, n_pad = _choose_tiles(n, tile_n)

    # Single fused pad+cast pass for the streamed input; padded rows are zero
    # and stay row-isolated through the MLP (sliced off at the end).
    if n_pad == n and x_cov.dtype == compute_dtype:
        x_p = x_cov
    else:
        x_p = jnp.zeros((n_pad, d_in), compute_dtype).at[:n].set(
            x_cov.astype(compute_dtype))

    # Batch-tiled x / out; weights & biases use constant index_maps so they
    # stay VMEM-resident and are DMA'd exactly once.
    in_specs = [pl.BlockSpec((tile, d_in), lambda i: (i, 0))]
    for li in range(num_linear):
        dip, dop = dims_pad[li], dims_pad[li + 1]
        in_specs.append(pl.BlockSpec((dip, dop), lambda i: (0, 0)))  # weight: resident
        in_specs.append(pl.BlockSpec((1, dop), lambda i: (0, 0)))    # bias:   resident

    d_out_pad = dims_pad[-1]
    out_spec = pl.BlockSpec((tile, d_out_pad), lambda i: (i, 0))     # lane-dense store

    kernel = functools.partial(
        _fused_mlp_kernel,
        num_tanh_layers=num_tanh,
        num_linear_layers=num_linear,
    )

    out_p = pl.pallas_call(
        kernel,
        out_shape=jax.ShapeDtypeStruct((n_pad, d_out_pad), x_cov.dtype),
        grid=(grid,),
        in_specs=in_specs,
        out_specs=out_spec,
        compiler_params=pltpu.CompilerParams(
            dimension_semantics=("parallel",),      # shards batch tiles across TCs (v7x)
            vmem_limit_bytes=32 * 1024 * 1024,      # safe on v5e/v6e/v7x, >> footprint
        ),
    )(x_p, *wb)

    return out_p[:n, :d_out]


def feature_map_forward(prepared, x_cov, *, tile_n=1024):
    return _forward_impl(
        x_cov,
        prepared["wb"],
        num_tanh=prepared["num_tanh"],
        num_linear=prepared["num_linear"],
        d_out=prepared["d_out"],
        dims_pad=prepared["dims_pad"],
        tile_n=tile_n,
    )


# ----------------------------------------------------------------------------
# Reference (pure JAX, f32) for sanity check.
# ----------------------------------------------------------------------------
def feature_map_reference(params, x_cov):
    h = x_cov
    for (w, b) in params["hidden"]:
        h = jnp.tanh(h @ w + b)
    if params["final"] is not None:
        w, b = params["final"]
        h = h @ w + b
    return h


if __name__ == "__main__":
    # Small shapes consistent with the module: x_cov is [N, d_in_x].
    N = 8
    d_in_x = 32
    layers_x = [64, 32]
    output_dim = 10

    key = jax.random.PRNGKey(0)
    key, kx = jax.random.split(key)
    x_cov = jax.random.normal(kx, (N, d_in_x), dtype=jnp.float32)
    params = init_feature_map_params(key, d_in_x, layers_x, output_dim)
    ref = feature_map_reference(params, x_cov)

    # f32 compute path: strict check of the fused-kernel structure.
    prep_f32 = prepare_feature_map_params(params, compute_dtype=jnp.float32)
    out_f32 = jax.block_until_ready(feature_map_forward(prep_f32, x_cov))
    assert out_f32.shape == (N, output_dim), out_f32.shape
    assert jnp.allclose(out_f32, ref, atol=1e-5, rtol=1e-5), \
        float(jnp.max(jnp.abs(out_f32 - ref)))

    # bf16 compute path (default): relaxed tolerance vs. the f32 reference.
    prep = prepare_feature_map_params(params)
    out = jax.block_until_ready(feature_map_forward(prep, x_cov))
    assert out.shape == (N, output_dim), out.shape
    assert jnp.allclose(out, ref, atol=5e-2, rtol=5e-2), \
        float(jnp.max(jnp.abs(out - ref)))

    # Row-padding path (N not a multiple of the sublane tile).
    key, kx2 = jax.random.split(key)
    x2 = jax.random.normal(kx2, (13, d_in_x), dtype=jnp.float32)
    out2 = jax.block_until_ready(feature_map_forward(prep, x2))
    ref2 = feature_map_reference(params, x2)
    assert out2.shape == (13, output_dim), out2.shape
    assert jnp.allclose(out2, ref2, atol=5e-2, rtol=5e-2), \
        float(jnp.max(jnp.abs(out2 - ref2)))

    # Multi-tile path (grid >= 2, balanced batch tiles).
    key, kx3 = jax.random.split(key)
    x3 = jax.random.normal(kx3, (300, d_in_x), dtype=jnp.float32)
    out3 = jax.block_until_ready(feature_map_forward(prep, x3))
    ref3 = feature_map_reference(params, x3)
    assert out3.shape == (300, output_dim), out3.shape
    assert jnp.allclose(out3, ref3, atol=5e-2, rtol=5e-2), \
        float(jnp.max(jnp.abs(out3 - ref3)))

    print("KERNEL_OK")
</pallas_src>

<mosaic_0001>
module attributes {stable_mosaic.version = 11 : i64} {
  func.func @_fused_mlp_kernel(%arg0: i32, %arg1: memref<8x32xf32, #tpu.memory_space<vmem>>, %arg2: memref<32x128xf32, #tpu.memory_space<vmem>>, %arg3: memref<1x128xf32, #tpu.memory_space<vmem>>, %arg4: memref<128x128xf32, #tpu.memory_space<vmem>>, %arg5: memref<1x128xf32, #tpu.memory_space<vmem>>, %arg6: memref<128x128xf32, #tpu.memory_space<vmem>>, %arg7: memref<1x128xf32, #tpu.memory_space<vmem>>, %arg8: memref<8x128xf32, #tpu.memory_space<vmem>>) attributes {dimension_semantics = [#tpu.dimension_semantics<parallel>], iteration_bounds = array<i64: 1>, scalar_prefetch = 0 : i64, scratch_operands = 0 : i64, tpu.core_type = #tpu.core_type<tc>, window_params = [{transform_indices = @transform_0, window_bounds = array<i64: 8, 32>}, {pipeline_mode = #tpu.pipeline_mode<synchronous>, transform_indices = @transform_1, window_bounds = array<i64: 32, 128>}, {pipeline_mode = #tpu.pipeline_mode<synchronous>, transform_indices = @transform_2, window_bounds = array<i64: 1, 128>}, {pipeline_mode = #tpu.pipeline_mode<synchronous>, transform_indices = @transform_3, window_bounds = array<i64: 128, 128>}, {pipeline_mode = #tpu.pipeline_mode<synchronous>, transform_indices = @transform_4, window_bounds = array<i64: 1, 128>}, {pipeline_mode = #tpu.pipeline_mode<synchronous>, transform_indices = @transform_5, window_bounds = array<i64: 128, 128>}, {pipeline_mode = #tpu.pipeline_mode<synchronous>, transform_indices = @transform_6, window_bounds = array<i64: 1, 128>}, {transform_indices = @transform_7, window_bounds = array<i64: 8, 128>}]} {
    %c0 = arith.constant 0 : index
    %c0_0 = arith.constant 0 : index
    %0 = vector.load %arg1[%c0, %c0_0] : memref<8x32xf32, #tpu.memory_space<vmem>>, vector<8x32xf32>
    %c0_1 = arith.constant 0 : index
    %c0_2 = arith.constant 0 : index
    %1 = vector.load %arg2[%c0_1, %c0_2] : memref<32x128xf32, #tpu.memory_space<vmem>>, vector<32x128xf32>
    %c0_3 = arith.constant 0 : index
    %c0_4 = arith.constant 0 : index
    %2 = vector.load %arg3[%c0_3, %c0_4] : memref<1x128xf32, #tpu.memory_space<vmem>>, vector<1x128xf32>
    %cst = arith.constant dense<0.000000e+00> : vector<8x128xf32>
    %3 = tpu.matmul %0, %1, %cst {dimension_numbers = #tpu.dot_dimension_numbers<[1], [0], [0], [1], [0, 0, 1, 1], [], []>} : vector<8x32xf32>, vector<32x128xf32>, vector<8x128xf32> -> vector<8x128xf32>
    %4 = vector.broadcast %2 : vector<1x128xf32> to vector<8x128xf32>
    %5 = arith.addf %3, %4 : vector<8x128xf32>
    %6 = math.tanh %5 : vector<8x128xf32>
    %c0_5 = arith.constant 0 : index
    %c0_6 = arith.constant 0 : index
    %7 = vector.load %arg4[%c0_5, %c0_6] : memref<128x128xf32, #tpu.memory_space<vmem>>, vector<128x128xf32>
    %c0_7 = arith.constant 0 : index
    %c0_8 = arith.constant 0 : index
    %8 = vector.load %arg5[%c0_7, %c0_8] : memref<1x128xf32, #tpu.memory_space<vmem>>, vector<1x128xf32>
    %cst_9 = arith.constant dense<0.000000e+00> : vector<8x128xf32>
    %9 = tpu.matmul %6, %7, %cst_9 {dimension_numbers = #tpu.dot_dimension_numbers<[1], [0], [0], [1], [0, 0, 1, 1], [], []>} : vector<8x128xf32>, vector<128x128xf32>, vector<8x128xf32> -> vector<8x128xf32>
    %10 = vector.broadcast %8 : vector<1x128xf32> to vector<8x128xf32>
    %11 = arith.addf %9, %10 : vector<8x128xf32>
    %12 = math.tanh %11 : vector<8x128xf32>
    %c0_10 = arith.constant 0 : index
    %c0_11 = arith.constant 0 : index
    %13 = vector.load %arg6[%c0_10, %c0_11] : memref<128x128xf32, #tpu.memory_space<vmem>>, vector<128x128xf32>
    %c0_12 = arith.constant 0 : index
    %c0_13 = arith.constant 0 : index
    %14 = vector.load %arg7[%c0_12, %c0_13] : memref<1x128xf32, #tpu.memory_space<vmem>>, vector<1x128xf32>
    %cst_14 = arith.constant dense<0.000000e+00> : vector<8x128xf32>
    %15 = tpu.matmul %12, %13, %cst_14 {dimension_numbers = #tpu.dot_dimension_numbers<[1], [0], [0], [1], [0, 0, 1, 1], [], []>} : vector<8x128xf32>, vector<128x128xf32>, vector<8x128xf32> -> vector<8x128xf32>
    %16 = vector.broadcast %14 : vector<1x128xf32> to vector<8x128xf32>
    %17 = arith.addf %15, %16 : vector<8x128xf32>
    %c0_15 = arith.constant 0 : index
    %c0_16 = arith.constant 0 : index
    %18 = vector.load %arg8[%c0_15, %c0_16] : memref<8x128xf32, #tpu.memory_space<vmem>>, vector<8x128xf32>
    tpu.vector_store %arg8[%c0_15, %c0_16], %17 {strides = array<i32>} : memref<8x128xf32, #tpu.memory_space<vmem>>, vector<8x128xf32>,
    return
  }
  func.func @transform_0(%arg0: i32) -> (i32, i32) {
    %c0_i32 = arith.constant 0 : i32
    %c0_i32_0 = arith.constant 0 : i32
    return %arg0, %c0_i32 : i32, i32
  }
  func.func @transform_1(%arg0: i32) -> (i32, i32) {
    %c0_i32 = arith.constant 0 : i32
    %c0_i32_0 = arith.constant 0 : i32
    %c0_i32_1 = arith.constant 0 : i32
    return %c0_i32, %c0_i32_0 : i32, i32
  }
  func.func @transform_2(%arg0: i32) -> (i32, i32) {
    %c0_i32 = arith.constant 0 : i32
    %c0_i32_0 = arith.constant 0 : i32
    %c0_i32_1 = arith.constant 0 : i32
    return %c0_i32, %c0_i32_0 : i32, i32
  }
  func.func @transform_3(%arg0: i32) -> (i32, i32) {
    %c0_i32 = arith.constant 0 : i32
    %c0_i32_0 = arith.constant 0 : i32
    %c0_i32_1 = arith.constant 0 : i32
    return %c0_i32, %c0_i32_0 : i32, i32
  }
  func.func @transform_4(%arg0: i32) -> (i32, i32) {
    %c0_i32 = arith.constant 0 : i32
    %c0_i32_0 = arith.constant 0 : i32
    %c0_i32_1 = arith.constant 0 : i32
    return %c0_i32, %c0_i32_0 : i32, i32
  }
  func.func @transform_5(%arg0: i32) -> (i32, i32) {
    %c0_i32 = arith.constant 0 : i32
    %c0_i32_0 = arith.constant 0 : i32
    %c0_i32_1 = arith.constant 0 : i32
    return %c0_i32, %c0_i32_0 : i32, i32
  }
  func.func @transform_6(%arg0: i32) -> (i32, i32) {
    %c0_i32 = arith.constant 0 : i32
    %c0_i32_0 = arith.constant 0 : i32
    %c0_i32_1 = arith.constant 0 : i32
    return %c0_i32, %c0_i32_0 : i32, i32
  }
  func.func @transform_7(%arg0: i32) -> (i32, i32) {
    %c0_i32 = arith.constant 0 : i32
    %c0_i32_0 = arith.constant 0 : i32
    return %arg0, %c0_i32 : i32, i32
  }
}

</mosaic_0001>

<llo_original>
// kernel: _forward_impl.1
$region0: #{_forward_impl.1}
  #allocation0 [shape = 'u32[]', space=smem, size = 0x4, offset = 0x4, fixed_abs, tag = 'smem constant byte address 0x4 - core index']
  #allocation1 [shape = 'u32[144,128]{1,0:T(1,128)}', space=vmem, size = 0x12000, scoped, tag = 'internal scratch']
  %s0 = inlined_call_operand.hbm [shape: f32[8,32], index: 0, kind: input, shape index: {}]
  %s1 = inlined_call_operand.hbm [shape: f32[32,128], index: 1, kind: input, shape index: {}]
  %s2 = inlined_call_operand.vmem [shape: f32[1,128], index: 2, kind: input, shape index: {}]
  %s3 = inlined_call_operand.hbm [shape: f32[128,128], index: 3, kind: input, shape index: {}]
  %s4 = inlined_call_operand.vmem [shape: f32[1,128], index: 4, kind: input, shape index: {}]
  %s5 = inlined_call_operand.hbm [shape: f32[128,128], index: 5, kind: input, shape index: {}]
  %s6 = inlined_call_operand.vmem [shape: f32[1,128], index: 6, kind: input, shape index: {}]
  %s7 = inlined_call_operand.hbm [shape: f32[8,128], index: 7, kind: output, shape index: {}]
  %s8 = sld [smem:[#allocation0]]
  $region54: #{_forward_impl.1} parent=0
    _
  %s10 = ssub.s32 1, %s8
  %s11 = scalar_select 0, %s10, %s8
  $region1: #{_forward_impl.1} parent=0
    #allocation2 [shape = 'u8[4096]{0}', space=vmem, size = 0x1000, scoped, tag = 'input window, operand 0, single buffered']
    #allocation3 [shape = 's32[1]{0}', space=sflag, size = 0x4, scoped, tag = 'scoped memory for _forward_impl.1']
    #allocation4 [shape = 's32[1]{0}', space=sflag, size = 0x4, scoped, tag = 'scoped memory for _forward_impl.1']
    #allocation5 [shape = 'u8[16384]{0}', space=vmem, size = 0x4000, scoped, tag = 'input window, operand 1, single buffered']
    #allocation6 [shape = 's32[1]{0}', space=sflag, size = 0x4, scoped, tag = 'scoped memory for _forward_impl.1']
    #allocation7 [shape = 'u8[65536]{0}', space=vmem, size = 0x10000, scoped, tag = 'input window, operand 3, single buffered']
    #allocation8 [shape = 'u8[65536]{0}', space=vmem, size = 0x10000, scoped, tag = 'input window, operand 5, single buffered']
    #allocation9 [shape = 's32[1]{0}', space=sflag, size = 0x4, scoped, tag = 'scoped memory for _forward_impl.1']
    #allocation10 [shape = 'u8[4096]{0}', space=vmem, size = 0x1000, scoped, tag = 'output window, operand 0, single buffered']
    %12 = vsyncpa [#allocation3], 0
    %13 = vsyncpa [#allocation6], 0
    %14 = vsyncpa [#allocation9], 0
    %15 = vsyncpa [#allocation4], 0
    // Predicated region
    $region2: #{_forward_impl.1} parent=1 // pred_check
      _
    $region3: #{_forward_impl.1} parent=1 // pred_check_branch
      %17 = sbr.rel (0) target = $region5
    $region4: #{_forward_impl.1} parent=1 // pred_region
      %s19 = ssub.s32 128, 128
      %20 = vsyncadd [#allocation3], %s19
      %s22 = sshll.u32 [#allocation2], 4
      %s23 = int_to_ptr.vmem [resolvable:$true] %s22
      %25 = dma.hbm_to_vmem [thread:$0]  %s0, 128, %s23, [#allocation3]
    $region5: #{_forward_impl.1} parent=1 // pred_fallthru
      _
    // Predicated region
    $region6: #{_forward_impl.1} parent=1 // pred_check
      _
    $region7: #{_forward_impl.1} parent=1 // pred_check_branch
      %27 = sbr.rel (0) target = $region9
    $region8: #{_forward_impl.1} parent=1 // pred_region
      %s29 = ssub.s32 512, 512
      %30 = vsyncadd [#allocation6], %s29
      %s31 = sshll.u32 [#allocation5], 4
      %s32 = int_to_ptr.vmem [resolvable:$true] %s31
      %37 = dma.hbm_to_vmem [thread:$0]  %s1, 512, %s32, [#allocation6], 128, 128, 8
    $region9: #{_forward_impl.1} parent=1 // pred_fallthru
      _
    // Predicated region
    $region10: #{_forward_impl.1} parent=1 // pred_check
      _
    $region11: #{_forward_impl.1} parent=1 // pred_check_branch
      %39 = sbr.rel (0) target = $region13
    $region12: #{_forward_impl.1} parent=1 // pred_region
      _
    $region13: #{_forward_impl.1} parent=1 // pred_fallthru
      _
    // Predicated region
    $region14: #{_forward_impl.1} parent=1 // pred_check
      _
    $region15: #{_forward_impl.1} parent=1 // pred_check_branch
      %41 = sbr.rel (0) target = $region17
    $region16: #{_forward_impl.1} parent=1 // pred_region
      %s43 = ssub.s32 2048, 2048
      %44 = vsyncadd [#allocation6], %s43
      %s45 = sshll.u32 [#allocation7], 4
      %s46 = int_to_ptr.vmem [resolvable:$true] %s45
      %51 = dma.hbm_to_vmem [thread:$0]  %s3, 2048, %s46, [#allocation6], 128, 128, 8
    $region17: #{_forward_impl.1} parent=1 // pred_fallthru
      _
    // Predicated region
    $region18: #{_forward_impl.1} parent=1 // pred_check
      _
    $region19: #{_forward_impl.1} parent=1 // pred_check_branch
      %53 = sbr.rel (0) target = $region21
    $region20: #{_forward_impl.1} parent=1 // pred_region
      _
    $region21: #{_forward_impl.1} parent=1 // pred_fallthru
      _
    // Predicated region
    $region22: #{_forward_impl.1} parent=1 // pred_check
      _
    $region23: #{_forward_impl.1} parent=1 // pred_check_branch
      %55 = sbr.rel (0) target = $region25
    $region24: #{_forward_impl.1} parent=1 // pred_region
      %s57 = ssub.s32 2048, 2048
      %58 = vsyncadd [#allocation9], %s57
      %s59 = sshll.u32 [#allocation8], 4
      %s60 = int_to_ptr.vmem [resolvable:$true] %s59
      %65 = dma.hbm_to_vmem [thread:$0]  %s5, 2048, %s60, [#allocation9], 128, 128, 8
    $region25: #{_forward_impl.1} parent=1 // pred_fallthru
      _
    // Predicated region
    $region26: #{_forward_impl.1} parent=1 // pred_check
      _
    $region27: #{_forward_impl.1} parent=1 // pred_check_branch
      %67 = sbr.rel (0) target = $region29
    $region28: #{_forward_impl.1} parent=1 // pred_region
      _
    $region29: #{_forward_impl.1} parent=1 // pred_fallthru
      _
    // Predicated region
    $region30: #{_forward_impl.1} parent=1 // pred_check
      _
    $region31: #{_forward_impl.1} parent=1 // pred_check_branch
      %69 = sbr.rel (0) target = $region33
    $region32: #{_forward_impl.1} parent=1 // pred_region
      %70 = dma.done [#allocation3], 128
    $region33: #{_forward_impl.1} parent=1 // pred_fallthru
      _
    // Predicated region
    $region34: #{_forward_impl.1} parent=1 // pred_check
      _
    $region35: #{_forward_impl.1} parent=1 // pred_check_branch
      %72 = sbr.rel (0) target = $region37
    $region36: #{_forward_impl.1} parent=1 // pred_region
      %73 = dma.done [#allocation6], 512
    $region37: #{_forward_impl.1} parent=1 // pred_fallthru
      _
    // Predicated region
    $region38: #{_forward_impl.1} parent=1 // pred_check
      _
    $region39: #{_forward_impl.1} parent=1 // pred_check_branch
      %75 = sbr.rel (0) target = $region41
    $region40: #{_forward_impl.1} parent=1 // pred_region
      %76 = dma.done [#allocation6], 2048
    $region41: #{_forward_impl.1} parent=1 // pred_fallthru
      _
    // Predicated region
    $region42: #{_forward_impl.1} parent=1 // pred_check
      _
    $region43: #{_forward_impl.1} parent=1 // pred_check_branch
      %78 = sbr.rel (0) target = $region45
    $region44: #{_forward_impl.1} parent=1 // pred_region
      %79 = dma.done [#allocation9], 2048
    $region45: #{_forward_impl.1} parent=1 // pred_fallthru
      _
    %v80 = vld [vmem:[#allocation2] sm:$0xff]
    %v81 = vld [vmem:[#allocation5] sm:$0xff]
    %v82 = vld [vmem:[#allocation5 + $0x8] sm:$0xff]
    %v83 = vld [vmem:[#allocation5 + $0x10] sm:$0xff]
    %v84 = vld [vmem:[#allocation5 + $0x18] sm:$0xff]
    %v85 = vld [vmem:[%s2] sm:$0x1]
    %v87 = vlaneseq
    %v88 = vshrl.u32 %v87, 7
    %v89 = vsub.s32 0, %v88
    %v90 = vrot.slane %v85, %v89
    %vm92 = vcmask 261120
    %v94 = vsel %vm92, %v80, 0
    %96 = vmatprep.subr.mxu0 0.0
    %97 = vmatpush1.msra.mxu0 %v81
    %98 = vmatprep.subr.mxu0 0.0
    %99 = vmatpush1.msra.mxu0 %v82
    %100 = vmatprep.subr.mxu0 0.0
    %101 = vmatpush1.msra.mxu0 %v83
    %102 = vmatprep.subr.mxu0 0.0
    %103 = vmatpush1.msra.mxu0 %v84
    %104 = vmatprep.subr.mxu0 0.0
    %105 = vmatpush1.msra.mxu0 0.0
    %106 = vmatprep.subr.mxu0 0.0
    %107 = vmatpush1.msra.mxu0 0.0
    %108 = vmatprep.subr.mxu0 0.0
    %109 = vmatpush1.msra.mxu0 0.0
    %110 = vmatprep.subr.mxu0 0.0
    %111 = vmatpush1.msra.mxu0 0.0
    %112 = vmatprep.subr.mxu0 0.0
    %113 = vmatpush1.msra.mxu0 0.0
    %114 = vmatprep.subr.mxu0 0.0
    %115 = vmatpush1.msra.mxu0 0.0
    %116 = vmatprep.subr.mxu0 0.0
    %117 = vmatpush1.msra.mxu0 0.0
    %118 = vmatprep.subr.mxu0 0.0
    %119 = vmatpush1.msra.mxu0 0.0
    %120 = vmatprep.subr.mxu0 0.0
    %121 = vmatpush1.msra.mxu0 0.0
    %122 = vmatprep.subr.mxu0 0.0
    %123 = vmatpush1.msra.mxu0 0.0
    %124 = vmatprep.subr.mxu0 0.0
    %125 = vmatpush1.msra.mxu0 0.0
    %126 = vmatprep.subr.mxu0 0.0
    %127 = vmatpush1.msra.mxu0 0.0
    %128 = vmatprep.subr.mxu0 0.0
    %129 = vmatpush1.msra.mxu0 0.0
    %130 = vmatprep.subr.mxu0 0.0
    %131 = vmatpush1.msra.mxu0 0.0
    %132 = vmatprep.subr.mxu0 0.0
    %133 = vmatpush1.msra.mxu0 0.0
    %134 = vmatprep.subr.mxu0 0.0
    %135 = vmatpush1.msra.mxu0 0.0
    %136 = vmatprep.subr.mxu0 0.0
    %137 = vmatpush1.msra.mxu0 0.0
    %138 = vmatprep.subr.mxu0 0.0
    %139 = vmatpush1.msra.mxu0 0.0
    %140 = vmatprep.subr.mxu0 0.0
    %141 = vmatpush1.msra.mxu0 0.0
    %142 = vmatprep.subr.mxu0 0.0
    %143 = vmatpush1.msra.mxu0 0.0
    %144 = vmatprep.subr.mxu0 0.0
    %145 = vmatpush1.msra.mxu0 0.0
    %146 = vmatprep.subr.mxu0 0.0
    %147 = vmatpush1.msra.mxu0 0.0
    %148 = vmatprep.subr.mxu0 0.0
    %149 = vmatpush1.msra.mxu0 0.0
    %150 = vmatprep.subr.mxu0 0.0
    %151 = vmatpush1.msra.mxu0 0.0
    %152 = vmatprep.subr.mxu0 0.0
    %153 = vmatpush1.msra.mxu0 0.0
    %154 = vmatprep.subr.mxu0 0.0
    %155 = vmatpush1.msra.mxu0 0.0
    %156 = vmatprep.subr.mxu0 0.0
    %157 = vmatpush1.msra.mxu0 0.0
    %158 = vmatprep.subr.mxu0 0.0
    %159 = vmatpush1.msra.mxu0 0.0
    %160 = vmatprep.mubr.f32.mxu0 0.0
    %161 = vmatmul.mubr.f32.gmra.mrb[0].mxu0 %v94
    %v162 = vpop.f32.mrb[0].mxu0
    %v163 = vadd.f32 %v90, %v162
    %v164 = vpop.f32.mrb[0].mxu0
    %165 = vdwg.mxu0
    %v166 = vtanh.pop %v163
    %v167 = vld [vmem:[#allocation7] sm:$0xff]
    %v168 = vld [vmem:[#allocation7 + $0x8] sm:$0xff]
    %v169 = vld [vmem:[#allocation7 + $0x10] sm:$0xff]
    %v170 = vld [vmem:[#allocation7 + $0x18] sm:$0xff]
    %v171 = vld [vmem:[#allocation7 + $0x20] sm:$0xff]
    %v172 = vld [vmem:[#allocation7 + $0x28] sm:$0xff]
    %v173 = vld [vmem:[#allocation7 + $0x30] sm:$0xff]
    %v174 = vld [vmem:[#allocation7 + $0x38] sm:$0xff]
    %v175 = vld [vmem:[#allocation7 + $0x40] sm:$0xff]
    %v176 = vld [vmem:[#allocation7 + $0x48] sm:$0xff]
    %v177 = vld [vmem:[#allocation7 + $0x50] sm:$0xff]
    %v178 = vld [vmem:[#allocation7 + $0x58] sm:$0xff]
    %v179 = vld [vmem:[#allocation7 + $0x60] sm:$0xff]
    %v180 = vld [vmem:[#allocation7 + $0x68] sm:$0xff]
    %v181 = vld [vmem:[#allocation7 + $0x70] sm:$0xff]
    %v182 = vld [vmem:[#allocation7 + $0x78] sm:$0xff]
    %v183 = vld [vmem:[%s4] sm:$0x1]
    %v185 = vlaneseq
    %v186 = vshrl.u32 %v185, 7
    %v187 = vsub.s32 0, %v186
    %v188 = vrot.slane %v183, %v187
    %190 = vmatprep.subr.mxu0 0.0
    %191 = vmatpush1.msra.mxu0 %v167
    %192 = vmatprep.subr.mxu0 0.0
    %193 = vmatpush1.msra.mxu0 %v168
    %194 = vmatprep.subr.mxu0 0.0
    %195 = vmatpush1.msra.mxu0 %v169
    %196 = vmatprep.subr.mxu0 0.0
    %197 = vmatpush1.msra.mxu0 %v170
    %198 = vmatprep.subr.mxu0 0.0
    %199 = vmatpush1.msra.mxu0 %v171
    %200 = vmatprep.subr.mxu0 0.0
    %201 = vmatpush1.msra.mxu0 %v172
    %202 = vmatprep.subr.mxu0 0.0
    %203 = vmatpush1.msra.mxu0 %v173
    %204 = vmatprep.subr.mxu0 0.0
    %205 = vmatpush1.msra.mxu0 %v174
    %206 = vmatprep.subr.mxu0 0.0
    %207 = vmatpush1.msra.mxu0 %v175
    %208 = vmatprep.subr.mxu0 0.0
    %209 = vmatpush1.msra.mxu0 %v176
    %210 = vmatprep.subr.mxu0 0.0
    %211 = vmatpush1.msra.mxu0 %v177
    %212 = vmatprep.subr.mxu0 0.0
    %213 = vmatpush1.msra.mxu0 %v178
    %214 = vmatprep.subr.mxu0 0.0
    %215 = vmatpush1.msra.mxu0 %v179
    %216 = vmatprep.subr.mxu0 0.0
    %217 = vmatpush1.msra.mxu0 %v180
    %218 = vmatprep.subr.mxu0 0.0
    %219 = vmatpush1.msra.mxu0 %v181
    %220 = vmatprep.subr.mxu0 0.0
    %221 = vmatpush1.msra.mxu0 %v182
    %222 = vmatprep.subr.mxu0 0.0
    %223 = vmatpush1.msra.mxu0 0.0
    %224 = vmatprep.subr.mxu0 0.0
    %225 = vmatpush1.msra.mxu0 0.0
    %226 = vmatprep.subr.mxu0 0.0
    %227 = vmatpush1.msra.mxu0 0.0
    %228 = vmatprep.subr.mxu0 0.0
    %229 = vmatpush1.msra.mxu0 0.0
    %230 = vmatprep.subr.mxu0 0.0
    %231 = vmatpush1.msra.mxu0 0.0
    %232 = vmatprep.subr.mxu0 0.0
    %233 = vmatpush1.msra.mxu0 0.0
    %234 = vmatprep.subr.mxu0 0.0
    %235 = vmatpush1.msra.mxu0 0.0
    %236 = vmatprep.subr.mxu0 0.0
    %237 = vmatpush1.msra.mxu0 0.0
    %238 = vmatprep.subr.mxu0 0.0
    %239 = vmatpush1.msra.mxu0 0.0
    %240 = vmatprep.subr.mxu0 0.0
    %241 = vmatpush1.msra.mxu0 0.0
    %242 = vmatprep.subr.mxu0 0.0
    %243 = vmatpush1.msra.mxu0 0.0
    %244 = vmatprep.subr.mxu0 0.0
    %245 = vmatpush1.msra.mxu0 0.0
    %246 = vmatprep.subr.mxu0 0.0
    %247 = vmatpush1.msra.mxu0 0.0
    %248 = vmatprep.subr.mxu0 0.0
    %249 = vmatpush1.msra.mxu0 0.0
    %250 = vmatprep.subr.mxu0 0.0
    %251 = vmatpush1.msra.mxu0 0.0
    %252 = vmatprep.subr.mxu0 0.0
    %253 = vmatpush1.msra.mxu0 0.0
    %254 = vmatprep.mubr.f32.mxu0 0.0
    %255 = vmatmul.mubr.f32.gmra.mrb[0].mxu0 %v166
    %v256 = vpop.f32.mrb[0].mxu0
    %v257 = vadd.f32 %v188, %v256
    %v258 = vpop.f32.mrb[0].mxu0
    %259 = vdwg.mxu0
    %v260 = vtanh.pop %v257
    %v261 = vld [vmem:[#allocation8] sm:$0xff]
    %v262 = vld [vmem:[#allocation8 + $0x8] sm:$0xff]
    %v263 = vld [vmem:[#allocation8 + $0x10] sm:$0xff]
    %v264 = vld [vmem:[#allocation8 + $0x18] sm:$0xff]
    %v265 = vld [vmem:[#allocation8 + $0x20] sm:$0xff]
    %v266 = vld [vmem:[#allocation8 + $0x28] sm:$0xff]
    %v267 = vld [vmem:[#allocation8 + $0x30] sm:$0xff]
    %v268 = vld [vmem:[#allocation8 + $0x38] sm:$0xff]
    %v269 = vld [vmem:[#allocation8 + $0x40] sm:$0xff]
    %v270 = vld [vmem:[#allocation8 + $0x48] sm:$0xff]
    %v271 = vld [vmem:[#allocation8 + $0x50] sm:$0xff]
    %v272 = vld [vmem:[#allocation8 + $0x58] sm:$0xff]
    %v273 = vld [vmem:[#allocation8 + $0x60] sm:$0xff]
    %v274 = vld [vmem:[#allocation8 + $0x68] sm:$0xff]
    %v275 = vld [vmem:[#allocation8 + $0x70] sm:$0xff]
    %v276 = vld [vmem:[#allocation8 + $0x78] sm:$0xff]
    %v277 = vld [vmem:[%s6] sm:$0x1]
    %v279 = vlaneseq
    %v280 = vshrl.u32 %v279, 7
    %v281 = vsub.s32 0, %v280
    %v282 = vrot.slane %v277, %v281
    %284 = vmatprep.subr.mxu0 0.0
    %285 = vmatpush1.msra.mxu0 %v261
    %286 = vmatprep.subr.mxu0 0.0
    %287 = vmatpush1.msra.mxu0 %v262
    %288 = vmatprep.subr.mxu0 0.0
    %289 = vmatpush1.msra.mxu0 %v263
    %290 = vmatprep.subr.mxu0 0.0
    %291 = vmatpush1.msra.mxu0 %v264
    %292 = vmatprep.subr.mxu0 0.0
    %293 = vmatpush1.msra.mxu0 %v265
    %294 = vmatprep.subr.mxu0 0.0
    %295 = vmatpush1.msra.mxu0 %v266
    %296 = vmatprep.subr.mxu0 0.0
    %297 = vmatpush1.msra.mxu0 %v267
    %298 = vmatprep.subr.mxu0 0.0
    %299 = vmatpush1.msra.mxu0 %v268
    %300 = vmatprep.subr.mxu0 0.0
    %301 = vmatpush1.msra.mxu0 %v269
    %302 = vmatprep.subr.mxu0 0.0
    %303 = vmatpush1.msra.mxu0 %v270
    %304 = vmatprep.subr.mxu0 0.0
    %305 = vmatpush1.msra.mxu0 %v271
    %306 = vmatprep.subr.mxu0 0.0
    %307 = vmatpush1.msra.mxu0 %v272
    %308 = vmatprep.subr.mxu0 0.0
    %309 = vmatpush1.msra.mxu0 %v273
    %310 = vmatprep.subr.mxu0 0.0
    %311 = vmatpush1.msra.mxu0 %v274
    %312 = vmatprep.subr.mxu0 0.0
    %313 = vmatpush1.msra.mxu0 %v275
    %314 = vmatprep.subr.mxu0 0.0
    %315 = vmatpush1.msra.mxu0 %v276
    %316 = vmatprep.subr.mxu0 0.0
    %317 = vmatpush1.msra.mxu0 0.0
    %318 = vmatprep.subr.mxu0 0.0
    %319 = vmatpush1.msra.mxu0 0.0
    %320 = vmatprep.subr.mxu0 0.0
    %321 = vmatpush1.msra.mxu0 0.0
    %322 = vmatprep.subr.mxu0 0.0
    %323 = vmatpush1.msra.mxu0 0.0
    %324 = vmatprep.subr.mxu0 0.0
    %325 = vmatpush1.msra.mxu0 0.0
    %326 = vmatprep.subr.mxu0 0.0
    %327 = vmatpush1.msra.mxu0 0.0
    %328 = vmatprep.subr.mxu0 0.0
    %329 = vmatpush1.msra.mxu0 0.0
    %330 = vmatprep.subr.mxu0 0.0
    %331 = vmatpush1.msra.mxu0 0.0
    %332 = vmatprep.subr.mxu0 0.0
    %333 = vmatpush1.msra.mxu0 0.0
    %334 = vmatprep.subr.mxu0 0.0
    %335 = vmatpush1.msra.mxu0 0.0
    %336 = vmatprep.subr.mxu0 0.0
    %337 = vmatpush1.msra.mxu0 0.0
    %338 = vmatprep.subr.mxu0 0.0
    %339 = vmatpush1.msra.mxu0 0.0
    %340 = vmatprep.subr.mxu0 0.0
    %341 = vmatpush1.msra.mxu0 0.0
    %342 = vmatprep.subr.mxu0 0.0
    %343 = vmatpush1.msra.mxu0 0.0
    %344 = vmatprep.subr.mxu0 0.0
    %345 = vmatpush1.msra.mxu0 0.0
    %346 = vmatprep.subr.mxu0 0.0
    %347 = vmatpush1.msra.mxu0 0.0
    %348 = vmatprep.mubr.f32.mxu0 0.0
    %349 = vmatmul.mubr.f32.gmra.mrb[0].mxu0 %v260
    %v350 = vpop.f32.mrb[0].mxu0
    %v351 = vadd.f32 %v282, %v350
    %v352 = vpop.f32.mrb[0].mxu0
    %353 = vdwg.mxu0
    %354 = vst [vmem:[#allocation10] sm:$0xff] %v351
    // Predicated region
    $region46: #{_forward_impl.1} parent=1 // pred_check
      _
    $region47: #{_forward_impl.1} parent=1 // pred_check_branch
      %356 = sbr.rel (0) target = $region49
    $region48: #{_forward_impl.1} parent=1 // pred_region
      %s358 = ssub.s32 128, 128
      %359 = vsyncadd [#allocation4], %s358
      %s361 = sshll.u32 [#allocation10], 4
      %s362 = int_to_ptr.vmem [resolvable:$true] %s361
      %364 = dma.vmem_to_hbm [thread:$0]  %s362, 128, %s7, [#allocation4]
    $region49: #{_forward_impl.1} parent=1 // pred_fallthru
      _
    // Predicated region
    $region50: #{_forward_impl.1} parent=1 // pred_check
      _
    $region51: #{_forward_impl.1} parent=1 // pred_check_branch
      %366 = sbr.rel (0) target = $region53
    $region52: #{_forward_impl.1} parent=1 // pred_region
      %367 = dma.done [#allocation4], 128
    $region53: #{_forward_impl.1} parent=1 // pred_fallthru
      _
    %368 = vsyncpa [#allocation3], 1
    %369 = vsyncpa [#allocation6], 1
    %370 = vsyncpa [#allocation9], 1
    %371 = vsyncpa [#allocation4], 1

</llo_original>
